<compile_context>
chip_gen: v7x
topology: tpu7x:2x2x1
jax: 0.10.0
libtpu: 0.0.40
codegen_flags: <defaults>
</compile_context>

<pallas_src>
import jax
import jax.numpy as jnp
from jax.experimental import pallas as pl
from jax.experimental.pallas import tpu as pltpu


LANE = 128           # lane width: last dim of every block
TARGET_TILE_M = 8192  # 4 MiB f32 blocks for large tensors
MIN_GRID = 8          # keep >= 8 grid steps so v7x megacore stays fed


# ----------------------------- parameter glue -------------------------------
def affine_sigmoid(latent, lo, hi):
    return lo + (hi - lo) * jax.nn.sigmoid(latent)


def inv_affine_sigmoid(val, lo, hi):
    y = (val - lo) / (hi - lo)
    return jnp.log(y / (1.0 - y))


# ------------------------------ Pallas kernel --------------------------------
def _frac_l2_kernel(params_ref, x_ref, y_ref, o_ref):
    # params (SMEM, f32): [exponent (= 2 - alpha), scale (= c**alpha / Gamma(3 - alpha))]
    exponent = params_ref[0]
    scale = params_ref[1]

    xv = x_ref[...].astype(jnp.float32)
    yv = y_ref[...].astype(jnp.float32)
    d = jnp.abs(xv - yv)
    # |x - y| ** (2 - alpha) via explicit log/exp on the EUP.
    # exponent > 1 (alpha_hi = 1), so d == 0 -> exponent*log(0) = -inf -> exp = 0,
    # matching the reference pow semantics.  NOTE: requires 2 - alpha > 0; if
    # alpha_hi is ever raised to >= 2 this (and the reference) changes behavior.
    out = jnp.exp(exponent * jnp.log(d)) * scale
    o_ref[...] = out.astype(o_ref.dtype)


# -------------------------------- wrapper ------------------------------------
def fractional_l2_loss(x, y, latent_alpha, latent_c,
                       alpha_lo=0.001, alpha_hi=1.0, c_lo=0.001, c_hi=1.0,
                       out_dtype=jnp.float32):
    """Elementwise fractional L2 loss; returns an array with the shape of x.

    out_dtype defaults to float32 (matches the f32 reference math); pass
    x.dtype to cut output HBM bytes when bf16/f16 output is acceptable.
    """
    # Robust to latent params being scalar, (1,), or any small shape.
    la = jnp.asarray(latent_alpha, jnp.float32).reshape(-1)[0]
    lc = jnp.asarray(latent_c, jnp.float32).reshape(-1)[0]
    alpha = affine_sigmoid(la, alpha_lo, alpha_hi)
    c = affine_sigmoid(lc, c_lo, c_hi)

    gamma_val = jnp.exp(jax.lax.lgamma(3.0 - alpha))    # Gamma(3 - alpha)
    exponent = 2.0 - alpha
    scale = (c ** alpha) / gamma_val                    # inv_c folded into scale
    params = jnp.stack([exponent, scale]).astype(jnp.float32)

    orig_shape = x.shape
    total = x.size
    out_dtype = jnp.dtype(out_dtype)

    xf = x.reshape(-1)
    yf = y.reshape(-1)

    # 128-aligned prefix goes through the Pallas kernel; the <128-element tail
    # (if any) is computed in plain jnp.  No full-tensor pad / slice copies.
    n_aligned = (total // LANE) * LANE
    M = n_aligned // LANE

    parts = []

    if M > 0:
        xm = xf[:n_aligned].reshape(M, LANE)
        ym = yf[:n_aligned].reshape(M, LANE)

        # Tile selection: big blocks (up to 4 MiB f32) for HBM roofline, but
        # keep >= MIN_GRID grid steps and sublane (8) alignment.
        per_step = -(-M // MIN_GRID)                    # cdiv(M, MIN_GRID)
        per_step = ((per_step + 7) // 8) * 8            # sublane align
        tile_m = min(TARGET_TILE_M, max(8, per_step))
        if M < tile_m:
            tile_m = max(8, ((M + 7) // 8) * 8)

        grid = (pl.cdiv(M, tile_m),)

        # Explicit scoped-VMEM budget so 4 MiB blocks also compile on v5e's
        # 16 MiB default; stays far below v7x's 64 MiB physical VMEM.
        block_bytes = tile_m * LANE * (x.dtype.itemsize
                                       + y.dtype.itemsize
                                       + out_dtype.itemsize)
        vmem_limit = min(max(2 * block_bytes + (4 << 20), 16 << 20), 48 << 20)

        cost = pl.CostEstimate(
            flops=5 * n_aligned,
            transcendentals=2 * n_aligned,              # log + exp on the EUP
            bytes_accessed=(x.dtype.itemsize + y.dtype.itemsize
                            + out_dtype.itemsize) * n_aligned,
        )

        out_main = pl.pallas_call(
            _frac_l2_kernel,
            out_shape=jax.ShapeDtypeStruct((M, LANE), out_dtype),
            grid_spec=pltpu.PrefetchScalarGridSpec(
                num_scalar_prefetch=0,
                grid=grid,
                in_specs=[
                    pl.BlockSpec(memory_space=pltpu.MemorySpace.SMEM),   # params (2,)
                    pl.BlockSpec((tile_m, LANE), lambda i: (i, 0)),      # x tile
                    pl.BlockSpec((tile_m, LANE), lambda i: (i, 0)),      # y tile
                ],
                out_specs=pl.BlockSpec((tile_m, LANE), lambda i: (i, 0)),
            ),
            compiler_params=pltpu.CompilerParams(
                dimension_semantics=("parallel",),
                vmem_limit_bytes=int(vmem_limit),
            ),
            cost_estimate=cost,
        )(params, xm, ym)
        parts.append(out_main.reshape(-1))

    if total > n_aligned:
        # <128-element tail: plain jnp, same folded math.
        xt = xf[n_aligned:].astype(jnp.float32)
        yt = yf[n_aligned:].astype(jnp.float32)
        tail = (jnp.abs(xt - yt) ** exponent) * scale
        parts.append(tail.astype(out_dtype))

    flat = parts[0] if len(parts) == 1 else jnp.concatenate(parts)
    return flat.reshape(orig_shape)


# ------------------------------ reference ------------------------------------
def fractional_l2_loss_ref(x, y, latent_alpha, latent_c,
                           alpha_lo=0.001, alpha_hi=1.0, c_lo=0.001, c_hi=1.0):
    alpha = affine_sigmoid(jnp.asarray(latent_alpha, jnp.float32).reshape(-1)[0],
                           alpha_lo, alpha_hi)
    c = affine_sigmoid(jnp.asarray(latent_c, jnp.float32).reshape(-1)[0], c_lo, c_hi)
    gamma_val = jnp.exp(jax.lax.lgamma(3.0 - alpha))
    return jnp.abs((x - y) / c) ** (2.0 - alpha) / gamma_val * c ** 2


# --------------------------------- main ---------------------------------------
if __name__ == "__main__":
    # Deterministic parameter init, exactly mirroring the module's __init__.
    alpha_init, alpha_lo, alpha_hi = 0.01, 0.001, 1.0
    c_init, c_lo, c_hi = 0.1, 0.001, 1.0
    latent_alpha = inv_affine_sigmoid(jnp.array([alpha_init], jnp.float32), alpha_lo, alpha_hi)
    latent_c = inv_affine_sigmoid(jnp.array([c_init], jnp.float32), c_lo, c_hi)

    # Small NCHW inputs (kernel works on a flattened lane-dense view).
    key = jax.random.PRNGKey(0)
    kx, ky = jax.random.split(key)
    x = jax.random.normal(kx, (2, 4, 16, 16), dtype=jnp.float32)
    y = jax.random.normal(ky, (2, 4, 16, 16), dtype=jnp.float32)

    out = fractional_l2_loss(x, y, latent_alpha, latent_c,
                             alpha_lo, alpha_hi, c_lo, c_hi)
    out = jax.block_until_ready(out)

    ref = fractional_l2_loss_ref(x, y, latent_alpha, latent_c,
                                 alpha_lo, alpha_hi, c_lo, c_hi)
    assert out.shape == x.shape and out.dtype == jnp.float32
    assert jnp.allclose(out, ref, rtol=1e-4, atol=1e-5), "mismatch vs reference"

    # Also exercise a non-lane-aligned size (kernel prefix + jnp tail path).
    xu = jax.random.normal(kx, (3, 5, 7), dtype=jnp.float32)
    yu = jax.random.normal(ky, (3, 5, 7), dtype=jnp.float32)
    out_u = jax.block_until_ready(
        fractional_l2_loss(xu, yu, latent_alpha, latent_c,
                           alpha_lo, alpha_hi, c_lo, c_hi))
    ref_u = fractional_l2_loss_ref(xu, yu, latent_alpha, latent_c,
                                   alpha_lo, alpha_hi, c_lo, c_hi)
    assert jnp.allclose(out_u, ref_u, rtol=1e-4, atol=1e-5), "mismatch (unaligned) vs reference"

    print("KERNEL_OK")
</pallas_src>

<mosaic_0001>
module attributes {stable_mosaic.version = 11 : i64} {
  func.func @_frac_l2_kernel(%arg0: i32, %arg1: memref<2xf32, #tpu.memory_space<smem>>, %arg2: memref<8x128xf32, #tpu.memory_space<vmem>>, %arg3: memref<8x128xf32, #tpu.memory_space<vmem>>, %arg4: memref<8x128xf32, #tpu.memory_space<vmem>>) attributes {dimension_semantics = [#tpu.dimension_semantics<parallel>], iteration_bounds = array<i64: 2>, scalar_prefetch = 0 : i64, scratch_operands = 0 : i64, tpu.core_type = #tpu.core_type<tc>, window_params = [{transform_indices = @transform_0, window_bounds = array<i64: 2>}, {transform_indices = @transform_1, window_bounds = array<i64: 8, 128>}, {transform_indices = @transform_2, window_bounds = array<i64: 8, 128>}, {transform_indices = @transform_3, window_bounds = array<i64: 8, 128>}]} {
    %c0 = arith.constant 0 : index
    %0 = memref.load %arg1[%c0] : memref<2xf32, #tpu.memory_space<smem>>
    %c1 = arith.constant 1 : index
    %1 = memref.load %arg1[%c1] : memref<2xf32, #tpu.memory_space<smem>>
    %c0_0 = arith.constant 0 : index
    %c0_1 = arith.constant 0 : index
    %2 = vector.load %arg2[%c0_0, %c0_1] : memref<8x128xf32, #tpu.memory_space<vmem>>, vector<8x128xf32>
    %c0_2 = arith.constant 0 : index
    %c0_3 = arith.constant 0 : index
    %3 = vector.load %arg3[%c0_2, %c0_3] : memref<8x128xf32, #tpu.memory_space<vmem>>, vector<8x128xf32>
    %4 = arith.subf %2, %3 : vector<8x128xf32>
    %5 = math.absf %4 : vector<8x128xf32>
    %6 = math.log %5 : vector<8x128xf32>
    %7 = vector.broadcast %0 : f32 to vector<8x128xf32>
    %8 = arith.mulf %7, %6 : vector<8x128xf32>
    %9 = math.exp %8 : vector<8x128xf32>
    %10 = vector.broadcast %1 : f32 to vector<8x128xf32>
    %11 = arith.mulf %9, %10 : vector<8x128xf32>
    %c0_4 = arith.constant 0 : index
    %c0_5 = arith.constant 0 : index
    %12 = vector.load %arg4[%c0_4, %c0_5] : memref<8x128xf32, #tpu.memory_space<vmem>>, vector<8x128xf32>
    tpu.vector_store %arg4[%c0_4, %c0_5], %11 {strides = array<i32>} : memref<8x128xf32, #tpu.memory_space<vmem>>, vector<8x128xf32>,
    return
  }
  func.func @transform_0(%arg0: i32) -> i32 {
    %c0_i32 = arith.constant 0 : i32
    %c0_i32_0 = arith.constant 0 : i32
    return %c0_i32 : i32
  }
  func.func @transform_1(%arg0: i32) -> (i32, i32) {
    %c0_i32 = arith.constant 0 : i32
    %c0_i32_0 = arith.constant 0 : i32
    return %arg0, %c0_i32 : i32, i32
  }
  func.func @transform_2(%arg0: i32) -> (i32, i32) {
    %c0_i32 = arith.constant 0 : i32
    %c0_i32_0 = arith.constant 0 : i32
    return %arg0, %c0_i32 : i32, i32
  }
  func.func @transform_3(%arg0: i32) -> (i32, i32) {
    %c0_i32 = arith.constant 0 : i32
    %c0_i32_0 = arith.constant 0 : i32
    return %arg0, %c0_i32 : i32, i32
  }
}

</mosaic_0001>

<llo_original>
// kernel: tpu_custom_call.1
$region0: #{tpu_custom_call.1}
  #allocation0 [shape = 'u32[]', space=smem, size = 0x4, offset = 0x4, fixed_abs, tag = 'smem constant byte address 0x4 - core index']
  #allocation1 [shape = 'u32[144,128]{1,0:T(1,128)}', space=vmem, size = 0x12000, scoped, tag = 'internal scratch']
  %s0 = inlined_call_operand.hbm [shape: f32[2], index: 0, kind: input, shape index: {}]
  %s1 = inlined_call_operand.hbm [shape: f32[16,128], index: 1, kind: input, shape index: {}]
  %s2 = inlined_call_operand.hbm [shape: f32[16,128], index: 2, kind: input, shape index: {}]
  %s3 = inlined_call_operand.hbm [shape: f32[16,128], index: 3, kind: output, shape index: {}]
  %s4 = sld [smem:[#allocation0]]
  $region57: #{tpu_custom_call.1} parent=0
    _
  %s6 = ssub.s32 1, %s4
  %s7 = scalar_select 0, %s6, %s4
  $region1: #{tpu_custom_call.1} parent=0
    #allocation2 [shape = 'u8[512]{0}', space=smem, size = 0x200, scoped, tag = 'input window, operand 0, single buffered']
    #allocation3 [shape = 's32[2]{0}', space=sflag, size = 0x8, scoped, tag = 'scoped memory for tpu_custom_call.1']
    #allocation4 [shape = 's32[2]{0}', space=sflag, size = 0x8, scoped, tag = 'scoped memory for tpu_custom_call.1']
    #allocation5 [shape = 's32[2]{0}', space=sflag, size = 0x8, scoped, tag = 'scoped memory for tpu_custom_call.1']
    #allocation6 [shape = 'u8[8192]{0}', space=vmem, size = 0x2000, scoped, tag = 'input window, operand 1']
    #allocation7 [shape = 'u8[8192]{0}', space=vmem, size = 0x2000, scoped, tag = 'input window, operand 2']
    #allocation8 [shape = 's32[2]{0}', space=sflag, size = 0x8, scoped, tag = 'scoped memory for tpu_custom_call.1']
    #allocation9 [shape = 'u8[8192]{0}', space=vmem, size = 0x2000, scoped, tag = 'output window, operand 0']
    %8 = vsyncpa [#allocation5], 0
    %9 = vsyncpa [#allocation3], 0
    %s10 = scalar_lea.sflag [#allocation3], 1
    %11 = vsyncpa %s10, 0
    %12 = vsyncpa [#allocation8], 0
    %s13 = scalar_lea.sflag [#allocation8], 1
    %14 = vsyncpa %s13, 0
    %15 = vsyncpa [#allocation4], 0
    %s16 = scalar_lea.sflag [#allocation4], 1
    %17 = vsyncpa %s16, 0
    loop: start=0, step=1, limit=4
    $region2: #{tpu_custom_call.1} parent=1 // loop_pre_header
      _
    $region3: #{tpu_custom_call.1} parent=1 // loop_header
      %s19 = sphi 0, %s23
      %p20 = scmp.ge.s32.totalorder %s19, 4
      %s27 = sphi 0, %s27
      %s29 = sphi 0, %s27
      %s30 = sphi 0, %s29
      %s44 = sphi 0, %s30
      %s50 = sphi 0, %s52
      %s53 = sphi 0, %s50
      %s54 = sphi 0, %s53
      %s70 = sphi 0, %s54
      %s76 = sphi 0, %s78
      %s79 = sphi 0, %s76
      %s80 = sphi 0, %s79
      %s96 = sphi 0, %s80
      %s102 = sphi 0, %s104
      %s105 = sphi 0, %s102
      %s106 = sphi 0, %s105
      %s122 = sphi 0, %s106
    $region4: #{tpu_custom_call.1} parent=1 // loop_header_branch
      %22 = sbr.rel (%p20) target = $region8
    $region5: #{tpu_custom_call.1} parent=1 // loop_body
      %s24 = ssub.s32 %s19, 1
      %s25 = ssub.s32 %s19, 2
      %s26 = sadd.s32 %s19, 1
      %s28 = sadd.s32 %s27, 1
      %p31 = scmp.eq.s32.totalorder %s19, 1
      %p32 = scmp.ne.s32.totalorder %s27, %s29
      %p33 = scmp.eq.s32.totalorder %s19, 0
      %p34 = por %p32, %p33
      %p35 = scmp.ne.s32.totalorder %s27, %s29
      %p36 = scmp.eq.s32.totalorder %s24, 1
      %p37 = por %p35, %p36
      %p38 = scmp.ne.s32.totalorder %s29, %s30
      %p39 = scmp.eq.s32.totalorder %s24, 0
      %p40 = por %p38, %p39
      %p41 = scmp.ne.s32.totalorder %s29, %s30
      %p42 = scmp.eq.s32.totalorder %s25, 1
      %p43 = por %p41, %p42
      %p45 = scmp.ne.s32.totalorder %s30, %s44
      %p46 = scmp.eq.s32.totalorder %s25, 0
      %p47 = por %p45, %p46
      %s48 = ssub.s32 %s19, %s26
      %p49 = scmp.eq.s32.totalorder %s48, 0
      %s51 = sadd.s32 %s50, 1
      %s52 = scalar_select %p49, %s50, %s51
      %p55 = pneg %p49
      %p56 = scmp.eq.s32.totalorder %s19, 1
      %p57 = por %p55, %p56
      %p58 = scmp.ne.s32.totalorder %s50, %s53
      %p59 = scmp.eq.s32.totalorder %s19, 0
      %p60 = por %p58, %p59
      %p61 = scmp.ne.s32.totalorder %s50, %s53
      %p62 = scmp.eq.s32.totalorder %s24, 1
      %p63 = por %p61, %p62
      %p64 = scmp.ne.s32.totalorder %s53, %s54
      %p65 = scmp.eq.s32.totalorder %s24, 0
      %p66 = por %p64, %p65
      %p67 = scmp.ne.s32.totalorder %s53, %s54
      %p68 = scmp.eq.s32.totalorder %s25, 1
      %p69 = por %p67, %p68
      %p71 = scmp.ne.s32.totalorder %s54, %s70
      %p72 = scmp.eq.s32.totalorder %s25, 0
      %p73 = por %p71, %p72
      %s74 = ssub.s32 %s19, %s26
      %p75 = scmp.eq.s32.totalorder %s74, 0
      %s77 = sadd.s32 %s76, 1
      %s78 = scalar_select %p75, %s76, %s77
      %p81 = pneg %p75
      %p82 = scmp.eq.s32.totalorder %s19, 1
      %p83 = por %p81, %p82
      %p84 = scmp.ne.s32.totalorder %s76, %s79
      %p85 = scmp.eq.s32.totalorder %s19, 0
      %p86 = por %p84, %p85
      %p87 = scmp.ne.s32.totalorder %s76, %s79
      %p88 = scmp.eq.s32.totalorder %s24, 1
      %p89 = por %p87, %p88
      %p90 = scmp.ne.s32.totalorder %s79, %s80
      %p91 = scmp.eq.s32.totalorder %s24, 0
      %p92 = por %p90, %p91
      %p93 = scmp.ne.s32.totalorder %s79, %s80
      %p94 = scmp.eq.s32.totalorder %s25, 1
      %p95 = por %p93, %p94
      %p97 = scmp.ne.s32.totalorder %s80, %s96
      %p98 = scmp.eq.s32.totalorder %s25, 0
      %p99 = por %p97, %p98
      %s100 = ssub.s32 %s19, %s26
      %p101 = scmp.eq.s32.totalorder %s100, 0
      %s103 = sadd.s32 %s102, 1
      %s104 = scalar_select %p101, %s102, %s103
      %p107 = pneg %p101
      %p108 = scmp.eq.s32.totalorder %s19, 1
      %p109 = por %p107, %p108
      %p110 = scmp.ne.s32.totalorder %s102, %s105
      %p111 = scmp.eq.s32.totalorder %s19, 0
      %p112 = por %p110, %p111
      %p113 = scmp.ne.s32.totalorder %s102, %s105
      %p114 = scmp.eq.s32.totalorder %s24, 1
      %p115 = por %p113, %p114
      %p116 = scmp.ne.s32.totalorder %s105, %s106
      %p117 = scmp.eq.s32.totalorder %s24, 0
      %p118 = por %p116, %p117
      %p119 = scmp.ne.s32.totalorder %s105, %s106
      %p120 = scmp.eq.s32.totalorder %s25, 1
      %p121 = por %p119, %p120
      %p123 = scmp.ne.s32.totalorder %s106, %s122
      %p124 = scmp.eq.s32.totalorder %s25, 0
      %p125 = por %p123, %p124
      %p126 = scmp.le.s32.totalorder 1, %s19
      %p127 = scmp.lt.s32.totalorder %s19, 3
      %p128 = pnand %p126, %p127
      %p129 = pneg %p128
      // Predicated region
      $region9: #{tpu_custom_call.1} parent=5 // pred_check
        _
      $region10: #{tpu_custom_call.1} parent=5 // pred_check_branch
        %131 = sbr.rel (%p128) target = $region12
      $region11: #{tpu_custom_call.1} parent=5 // pred_region
        %s132 = ssub.s32 %s19, 1
        // Predicated region
        $region13: #{tpu_custom_call.1} parent=11 // pred_check
          %p133 = pneg %p40
        $region14: #{tpu_custom_call.1} parent=11 // pred_check_branch
          %135 = sbr.rel (%p133) target = $region16
        $region15: #{tpu_custom_call.1} parent=11 // pred_region
          %s137 = ssub.s32 16, 16
          %138 = vsyncadd [#allocation5], %s137
          %141 = dma.hbm_to_smem %s0, 16, [#allocation2], [#allocation5]
        $region16: #{tpu_custom_call.1} parent=11 // pred_fallthru
          _
      $region12: #{tpu_custom_call.1} parent=5 // pred_fallthru
        _
      %p142 = scmp.lt.s32.totalorder %s19, 2
      // Predicated region
      $region17: #{tpu_custom_call.1} parent=5 // pred_check
        %p143 = pneg %p142
      $region18: #{tpu_custom_call.1} parent=5 // pred_check_branch
        %145 = sbr.rel (%p143) target = $region20
      $region19: #{tpu_custom_call.1} parent=5 // pred_region
        // Predicated region
        $region21: #{tpu_custom_call.1} parent=19 // pred_check
          %p146 = pneg %p60
        $region22: #{tpu_custom_call.1} parent=19 // pred_check_branch
          %148 = sbr.rel (%p146) target = $region24
        $region23: #{tpu_custom_call.1} parent=19 // pred_region
          %s149 = sand.u32 %s50, 1
          %s150 = scalar_lea.sflag [#allocation3], %s149
          %s151 = sand.u32 %s50, 1
          %s152 = smul.addr %s151, 8
          %s153 = scalar_lea.vmem [#allocation6], %s152
          %s155 = ssub.s32 128, 128
          %156 = vsyncadd %s150, %s155
          %s157 = smul.addr %s19, 128
          %s158 = scalar_lea.hbm %s1, %s157
          %s160 = sshll.u32 %s153, 4
          %s161 = int_to_ptr.vmem [resolvable:$true] %s160
          %163 = dma.hbm_to_vmem [thread:$0]  %s158, 128, %s161, %s150
        $region24: #{tpu_custom_call.1} parent=19 // pred_fallthru
          _
        // Predicated region
        $region25: #{tpu_custom_call.1} parent=19 // pred_check
          %p164 = pneg %p86
        $region26: #{tpu_custom_call.1} parent=19 // pred_check_branch
          %166 = sbr.rel (%p164) target = $region28
        $region27: #{tpu_custom_call.1} parent=19 // pred_region
          %s167 = sand.u32 %s76, 1
          %s168 = scalar_lea.sflag [#allocation8], %s167
          %s169 = sand.u32 %s76, 1
          %s170 = smul.addr %s169, 8
          %s171 = scalar_lea.vmem [#allocation7], %s170
          %s173 = ssub.s32 128, 128
          %174 = vsyncadd %s168, %s173
          %s175 = smul.addr %s19, 128
          %s176 = scalar_lea.hbm %s2, %s175
          %s178 = sshll.u32 %s171, 4
          %s179 = int_to_ptr.vmem [resolvable:$true] %s178
          %181 = dma.hbm_to_vmem [thread:$0]  %s176, 128, %s179, %s168
        $region28: #{tpu_custom_call.1} parent=19 // pred_fallthru
          _
      $region20: #{tpu_custom_call.1} parent=5 // pred_fallthru
        _
      %p182 = scmp.le.s32.totalorder 1, %s19
      %p183 = scmp.lt.s32.totalorder %s19, 3
      %p184 = pnand %p182, %p183
      %p185 = pneg %p184
      // Predicated region
      $region29: #{tpu_custom_call.1} parent=5 // pred_check
        _
      $region30: #{tpu_custom_call.1} parent=5 // pred_check_branch
        %187 = sbr.rel (%p184) target = $region32
      $region31: #{tpu_custom_call.1} parent=5 // pred_region
        %s188 = ssub.s32 %s19, 1
        // Predicated region
        $region33: #{tpu_custom_call.1} parent=31 // pred_check
          %p189 = pneg %p40
        $region34: #{tpu_custom_call.1} parent=31 // pred_check_branch
          %191 = sbr.rel (%p189) target = $region36
        $region35: #{tpu_custom_call.1} parent=31 // pred_region
          %192 = dma.done [#allocation5], 16
        $region36: #{tpu_custom_call.1} parent=31 // pred_fallthru
          _
        %s193 = sand.u32 %s53, 1
        %s194 = scalar_lea.sflag [#allocation3], %s193
        %s195 = sand.u32 %s53, 1
        %s196 = smul.addr %s195, 8
        %s197 = scalar_lea.vmem [#allocation6], %s196
        // Predicated region
        $region37: #{tpu_custom_call.1} parent=31 // pred_check
          %p198 = pneg %p66
        $region38: #{tpu_custom_call.1} parent=31 // pred_check_branch
          %200 = sbr.rel (%p198) target = $region40
        $region39: #{tpu_custom_call.1} parent=31 // pred_region
          %201 = dma.done %s194, 128
        $region40: #{tpu_custom_call.1} parent=31 // pred_fallthru
          _
        %s202 = sand.u32 %s79, 1
        %s203 = scalar_lea.sflag [#allocation8], %s202
        %s204 = sand.u32 %s79, 1
        %s205 = smul.addr %s204, 8
        %s206 = scalar_lea.vmem [#allocation7], %s205
        // Predicated region
        $region41: #{tpu_custom_call.1} parent=31 // pred_check
          %p207 = pneg %p92
        $region42: #{tpu_custom_call.1} parent=31 // pred_check_branch
          %209 = sbr.rel (%p207) target = $region44
        $region43: #{tpu_custom_call.1} parent=31 // pred_region
          %210 = dma.done %s203, 128
        $region44: #{tpu_custom_call.1} parent=31 // pred_fallthru
          _
        %211 = sfence
        %p212 = pneg %p40
        %p213 = pneg %p37
        %s214 = sand.u32 %s53, 1
        %s215 = scalar_lea.sflag [#allocation3], %s214
        %s216 = sand.u32 %s53, 1
        %s217 = smul.addr %s216, 8
        %s218 = scalar_lea.vmem [#allocation6], %s217
        %p219 = pneg %p66
        %p220 = pneg %p63
        %s221 = sand.u32 %s79, 1
        %s222 = scalar_lea.sflag [#allocation8], %s221
        %s223 = sand.u32 %s79, 1
        %s224 = smul.addr %s223, 8
        %s225 = scalar_lea.vmem [#allocation7], %s224
        %p226 = pneg %p92
        %p227 = pneg %p89
        %p228 = pneg %p118
        %p229 = pneg %p115
        %s230 = sand.u32 %s105, 1
        %s231 = scalar_lea.sflag [#allocation4], %s230
        %s232 = sand.u32 %s105, 1
        %s233 = smul.addr %s232, 8
        %s234 = scalar_lea.vmem [#allocation9], %s233
        %s235 = sld [smem:[#allocation2]]
        %s236 = sld [smem:[#allocation2 + $0x1]]
        %v237 = vld [vmem:[%s197] sm:$0xff]
        %v238 = vld [vmem:[%s206] sm:$0xff]
        %v239 = vsub.f32 %v237, %v238
        %v240 = vand.u32 2147483647, %v239
        %v241 = vlog2.pop %v240
        %v242 = vmul.f32 %v241, 0.6931472
        %v243 = vstv %s235
        %v244 = vmul.f32 %v243, %v242
        %v245 = vmul.f32 %v244, 1.442695
        %v246 = vpow.pop %v245
        %v247 = vstv %s236
        %v248 = vmul.f32 %v246, %v247
        %249 = vst [vmem:[%s234] sm:$0xff] %v248
        %s250 = sand.u32 %s105, 1
        %s251 = scalar_lea.sflag [#allocation4], %s250
        %s252 = sand.u32 %s105, 1
        %s253 = smul.addr %s252, 8
        %s254 = scalar_lea.vmem [#allocation9], %s253
        // Predicated region
        $region45: #{tpu_custom_call.1} parent=31 // pred_check
          %p255 = pneg %p115
        $region46: #{tpu_custom_call.1} parent=31 // pred_check_branch
          %257 = sbr.rel (%p255) target = $region48
        $region47: #{tpu_custom_call.1} parent=31 // pred_region
          %s259 = ssub.s32 128, 128
          %260 = vsyncadd %s251, %s259
          %s261 = smul.addr %s24, 128
          %s262 = scalar_lea.hbm %s3, %s261
          %s264 = sshll.u32 %s254, 4
          %s265 = int_to_ptr.vmem [resolvable:$true] %s264
          %267 = dma.vmem_to_hbm [thread:$0]  %s265, 128, %s262, %s251
        $region48: #{tpu_custom_call.1} parent=31 // pred_fallthru
          _
      $region32: #{tpu_custom_call.1} parent=5 // pred_fallthru
        _
      %p268 = scmp.le.s32.totalorder 2, %s19
      // Predicated region
      $region49: #{tpu_custom_call.1} parent=5 // pred_check
        %p269 = pneg %p268
      $region50: #{tpu_custom_call.1} parent=5 // pred_check_branch
        %271 = sbr.rel (%p269) target = $region52
      $region51: #{tpu_custom_call.1} parent=5 // pred_region
        %s272 = ssub.s32 %s19, 2
        // Predicated region
        $region53: #{tpu_custom_call.1} parent=51 // pred_check
          %p273 = pneg %p121
        $region54: #{tpu_custom_call.1} parent=51 // pred_check_branch
          %275 = sbr.rel (%p273) target = $region56
        $region55: #{tpu_custom_call.1} parent=51 // pred_region
          %s276 = sand.u32 %s106, 1
          %s277 = scalar_lea.sflag [#allocation4], %s276
          %s278 = sand.u32 %s106, 1
          %s279 = smul.addr %s278, 8
          %s280 = scalar_lea.vmem [#allocation9], %s279
          %281 = dma.done %s277, 128
        $region56: #{tpu_custom_call.1} parent=51 // pred_fallthru
          _
      $region52: #{tpu_custom_call.1} parent=5 // pred_fallthru
        _
    $region6: #{tpu_custom_call.1} parent=1 // loop_footer
      %s23 = sadd.s32 1, %s19
    $region7: #{tpu_custom_call.1} parent=1 // loop_footer_branch
      %18 = sbr.rel target = $region3
    $region8: #{tpu_custom_call.1} parent=1 // loop_exit
      _
    %282 = vsyncpa [#allocation3], 1
    %s283 = scalar_lea.sflag [#allocation3], 1
    %284 = vsyncpa %s283, 1
    %285 = vsyncpa [#allocation8], 1
    %s286 = scalar_lea.sflag [#allocation8], 1
    %287 = vsyncpa %s286, 1
    %288 = vsyncpa [#allocation4], 1
    %s289 = scalar_lea.sflag [#allocation4], 1
    %290 = vsyncpa %s289, 1
    %291 = vsyncpa [#allocation5], 1
    %s292 = scalar_lea.sflag [#allocation5], 1
    %293 = vsyncpa %s292, 1

</llo_original>
